<compile_context>
chip_gen: v5e
topology: v5e:2x2
jax: 0.10.0
libtpu: 0.0.40
codegen_flags: <defaults>
</compile_context>

<pallas_src>
import functools
import math

import jax
import jax.numpy as jnp
from jax.experimental import pallas as pl
from jax.experimental.pallas import tpu as pltpu


def _rmsnorm_kernel(x_ref, g_ref, o_ref, *, inv_dim, eps):
    # x_ref: (TR, Dp) tile in VMEM; g_ref: (1, Dp) f32; o_ref: (TR, Dp)
    x = x_ref[...].astype(jnp.float32)
    # sum * (1/true_dim) == mean over the real (unpadded) hidden dim; padded
    # lanes are zero so they do not perturb the sum.
    ms = jnp.sum(x * x, axis=-1, keepdims=True) * inv_dim      # (TR, 1)
    inv = jax.lax.rsqrt(ms + eps)                               # (TR, 1)
    o_ref[...] = (g_ref[...] * inv).astype(o_ref.dtype)         # (TR, Dp)


def _choose_row_tile(rows, dim_p, dtype_size, target_bytes=3 * 1024 * 1024):
    """Row tile: multiple of 8 sublanes, ~3 MiB per input buffer (byte target,
    not a row cap), never taller than the (sublane-rounded) row count, and
    shrunk if needed so the grid has >= 2 steps (keeps both v7x TCs busy)."""
    tr = target_bytes // max(1, dim_p * dtype_size)
    tr = max(8, (int(tr) // 8) * 8)
    rows_rounded = ((rows + 7) // 8) * 8
    tr = min(tr, rows_rounded)
    if rows_rounded > 8 and pl.cdiv(rows, tr) < 2:
        tr = max(8, ((pl.cdiv(rows, 2) + 7) // 8) * 8)
    return tr


def rmsnorm(x, gamma, eps=1e-6):
    """Pallas RMSNorm matching the PyTorch module's forward exactly."""
    orig_shape = x.shape
    dim = gamma.shape[0]
    assert orig_shape[-1] == dim, "last dim of x must match gamma dim"

    rows = math.prod(orig_shape[:-1]) if len(orig_shape) > 1 else 1
    x2d = x.reshape(rows, dim)
    g2d = gamma.astype(jnp.float32).reshape(1, dim)

    # Lane-dense path: pad hidden dim to a 128 multiple only when unaligned
    # (typical hidden sizes are already 128-aligned and skip this entirely).
    dim_p = ((dim + 127) // 128) * 128
    pad_lanes = dim_p - dim
    if pad_lanes:
        x2d = jnp.pad(x2d, ((0, 0), (0, pad_lanes)))
        g2d = jnp.pad(g2d, ((0, 0), (0, pad_lanes)))

    dtype_size = jnp.dtype(x.dtype).itemsize
    tr = _choose_row_tile(rows, dim_p, dtype_size)
    grid = (pl.cdiv(rows, tr),)   # ragged final block handled by Pallas

    out_itemsize = jnp.dtype(x.dtype).itemsize
    cost = pl.CostEstimate(
        flops=3 * rows * dim_p,
        transcendentals=rows,
        bytes_accessed=rows * dim_p * (dtype_size + out_itemsize) + dim_p * 4,
    )

    out = pl.pallas_call(
        functools.partial(_rmsnorm_kernel, inv_dim=1.0 / dim, eps=eps),
        out_shape=jax.ShapeDtypeStruct((rows, dim_p), x.dtype),
        grid_spec=pl.GridSpec(
            grid=grid,
            in_specs=[
                pl.BlockSpec((tr, dim_p), lambda i: (i, 0)),
                pl.BlockSpec((1, dim_p), lambda i: (0, 0)),   # gamma: resident
            ],
            out_specs=pl.BlockSpec((tr, dim_p), lambda i: (i, 0)),
        ),
        compiler_params=pltpu.CompilerParams(
            dimension_semantics=("parallel",),
            # Headroom for 2x(in)+2x(out) double buffers at ~3 MiB plus the
            # in-kernel f32 temporaries; within scoped/physical VMEM on
            # v5e (128 MiB phys), v6e (128 MiB), v7x (64 MiB).
            vmem_limit_bytes=48 << 20,
        ),
        cost_estimate=cost,
    )(x2d, g2d)

    if pad_lanes:
        out = out[:, :dim]
    return out.reshape(orig_shape[:-1] + (dim,))


def _ref_rmsnorm(x, gamma, eps=1e-6):
    # Mirrors the PyTorch forward exactly (no multiply by x).
    return gamma * jax.lax.rsqrt(jnp.mean(x * x, axis=-1, keepdims=True) + eps)


if __name__ == "__main__":
    key = jax.random.PRNGKey(0)
    batch, seq, hidden = 2, 8, 32
    x = jax.random.normal(key, (batch, seq, hidden), dtype=jnp.float32)
    # Module initializes gamma = ones(dim).
    gamma = jnp.ones((hidden,), dtype=jnp.float32)

    out = rmsnorm(x, gamma, eps=1e-6)
    jax.block_until_ready(out)

    ref = _ref_rmsnorm(x, gamma)
    assert out.shape == ref.shape
    assert jnp.allclose(out, ref, atol=1e-5, rtol=1e-5)

    # Extra check: row count not a multiple of the tile (ragged final block)
    # and a non-trivial gamma, to validate the no-pad / OOB-discard path.
    key2 = jax.random.PRNGKey(1)
    x2 = jax.random.normal(key2, (3, 7, hidden), dtype=jnp.float32)
    g2 = jax.random.normal(jax.random.PRNGKey(2), (hidden,), dtype=jnp.float32)
    out2 = rmsnorm(x2, g2, eps=1e-6)
    jax.block_until_ready(out2)
    assert jnp.allclose(out2, _ref_rmsnorm(x2, g2), atol=1e-5, rtol=1e-5)

    print("KERNEL_OK")
</pallas_src>

<mosaic_0001>
module attributes {stable_mosaic.version = 11 : i64} {
  func.func @_rmsnorm_kernel(%arg0: i32, %arg1: memref<8x128xf32, #tpu.memory_space<vmem>>, %arg2: memref<1x128xf32, #tpu.memory_space<vmem>>, %arg3: memref<8x128xf32, #tpu.memory_space<vmem>>) attributes {dimension_semantics = [#tpu.dimension_semantics<parallel>], iteration_bounds = array<i64: 2>, scalar_prefetch = 0 : i64, scratch_operands = 0 : i64, tpu.core_type = #tpu.core_type<tc>, window_params = [{transform_indices = @transform_0, window_bounds = array<i64: 8, 128>}, {pipeline_mode = #tpu.pipeline_mode<synchronous>, transform_indices = @transform_1, window_bounds = array<i64: 1, 128>}, {transform_indices = @transform_2, window_bounds = array<i64: 8, 128>}]} {
    %c0 = arith.constant 0 : index
    %c0_0 = arith.constant 0 : index
    %0 = vector.load %arg1[%c0, %c0_0] : memref<8x128xf32, #tpu.memory_space<vmem>>, vector<8x128xf32>
    %1 = arith.mulf %0, %0 : vector<8x128xf32>
    %cst = arith.constant dense<0.000000e+00> : vector<8xf32>
    %2 = vector.multi_reduction <add>, %1, %cst [1] : vector<8x128xf32> to vector<8xf32>
    %3 = vector.shape_cast %2 : vector<8xf32> to vector<8x1xf32>
    %cst_1 = arith.constant 3.125000e-02 : f32
    %4 = vector.broadcast %cst_1 : f32 to vector<8x1xf32>
    %5 = arith.mulf %3, %4 : vector<8x1xf32>
    %cst_2 = arith.constant 9.99999997E-7 : f32
    %6 = vector.broadcast %cst_2 : f32 to vector<8x1xf32>
    %7 = arith.addf %5, %6 : vector<8x1xf32>
    %8 = math.rsqrt %7 : vector<8x1xf32>
    %c0_3 = arith.constant 0 : index
    %c0_4 = arith.constant 0 : index
    %9 = vector.load %arg2[%c0_3, %c0_4] : memref<1x128xf32, #tpu.memory_space<vmem>>, vector<1x128xf32>
    %10 = vector.broadcast %9 : vector<1x128xf32> to vector<8x128xf32>
    %11 = vector.broadcast %8 : vector<8x1xf32> to vector<8x128xf32>
    %12 = arith.mulf %10, %11 : vector<8x128xf32>
    %c0_5 = arith.constant 0 : index
    %c0_6 = arith.constant 0 : index
    %13 = vector.load %arg3[%c0_5, %c0_6] : memref<8x128xf32, #tpu.memory_space<vmem>>, vector<8x128xf32>
    tpu.vector_store %arg3[%c0_5, %c0_6], %12 {strides = array<i32>} : memref<8x128xf32, #tpu.memory_space<vmem>>, vector<8x128xf32>,
    return
  }
  func.func @transform_0(%arg0: i32) -> (i32, i32) {
    %c0_i32 = arith.constant 0 : i32
    %c0_i32_0 = arith.constant 0 : i32
    return %arg0, %c0_i32 : i32, i32
  }
  func.func @transform_1(%arg0: i32) -> (i32, i32) {
    %c0_i32 = arith.constant 0 : i32
    %c0_i32_0 = arith.constant 0 : i32
    %c0_i32_1 = arith.constant 0 : i32
    return %c0_i32, %c0_i32_0 : i32, i32
  }
  func.func @transform_2(%arg0: i32) -> (i32, i32) {
    %c0_i32 = arith.constant 0 : i32
    %c0_i32_0 = arith.constant 0 : i32
    return %arg0, %c0_i32 : i32, i32
  }
}

</mosaic_0001>

<llo_original>
// kernel: tpu_custom_call.1
$region0: #{tpu_custom_call.1}
  #allocation0 [shape = 'u32[]', space=smem, size = 0x4, offset = 0x4, fixed_abs, tag = 'smem constant byte address 0x4 - core index']
  #allocation1 [shape = 'u32[72,128]{1,0:T(1,128)}', space=vmem, size = 0x9000, scoped, tag = 'internal scratch']
  %s0 = inlined_call_operand.hbm [shape: f32[16,128], index: 0, kind: input, shape index: {}]
  %s1 = inlined_call_operand.hbm [shape: f32[1,128], index: 1, kind: input, shape index: {}]
  %s2 = inlined_call_operand.hbm [shape: f32[16,128], index: 2, kind: output, shape index: {}]
  %s3 = sld [smem:[#allocation0]]
  $region49: #{tpu_custom_call.1} parent=0
    _
  %s5 = ssub.s32 1, %s3
  %s6 = scalar_select 0, %s5, %s3
  $region1: #{tpu_custom_call.1} parent=0
    #allocation2 [shape = 'u8[8192]{0}', space=vmem, size = 0x2000, scoped, tag = 'input window, operand 0']
    #allocation3 [shape = 's32[2]{0}', space=sflag, size = 0x8, scoped, tag = 'scoped memory for tpu_custom_call.1']
    #allocation4 [shape = 's32[2]{0}', space=sflag, size = 0x8, scoped, tag = 'scoped memory for tpu_custom_call.1']
    #allocation5 [shape = 'u8[512]{0}', space=vmem, size = 0x400, scoped, tag = 'input window, operand 1, single buffered']
    #allocation6 [shape = 's32[1]{0}', space=sflag, size = 0x4, scoped, tag = 'scoped memory for tpu_custom_call.1']
    #allocation7 [shape = 'u8[8192]{0}', space=vmem, size = 0x2000, scoped, tag = 'output window, operand 0']
    %7 = vsyncpa [#allocation3], 0
    %s8 = scalar_lea.sflag [#allocation3], 1
    %9 = vsyncpa %s8, 0
    %10 = vsyncpa [#allocation6], 0
    %11 = vsyncpa [#allocation4], 0
    %s12 = scalar_lea.sflag [#allocation4], 1
    %13 = vsyncpa %s12, 0
    loop: start=0, step=1, limit=4
    $region2: #{tpu_custom_call.1} parent=1 // loop_pre_header
      _
    $region3: #{tpu_custom_call.1} parent=1 // loop_header
      %s15 = sphi 0, %s19
      %p16 = scmp.ge.s32.totalorder %s15, 4
      %s25 = sphi 0, %s27
      %s28 = sphi 0, %s25
      %s29 = sphi 0, %s28
      %s45 = sphi 0, %s29
      %s49 = sphi 0, %s49
      %s51 = sphi 0, %s49
      %s52 = sphi 0, %s51
      %s66 = sphi 0, %s52
      %s72 = sphi 0, %s74
      %s75 = sphi 0, %s72
      %s76 = sphi 0, %s75
      %s92 = sphi 0, %s76
    $region4: #{tpu_custom_call.1} parent=1 // loop_header_branch
      %18 = sbr.rel (%p16) target = $region8
    $region5: #{tpu_custom_call.1} parent=1 // loop_body
      %s20 = ssub.s32 %s15, 1
      %s21 = ssub.s32 %s15, 2
      %s22 = sadd.s32 %s15, 1
      %s23 = ssub.s32 %s15, %s22
      %p24 = scmp.eq.s32.totalorder %s23, 0
      %s26 = sadd.s32 %s25, 1
      %s27 = scalar_select %p24, %s25, %s26
      %p30 = pneg %p24
      %p31 = scmp.eq.s32.totalorder %s15, 1
      %p32 = por %p30, %p31
      %p33 = scmp.ne.s32.totalorder %s25, %s28
      %p34 = scmp.eq.s32.totalorder %s15, 0
      %p35 = por %p33, %p34
      %p36 = scmp.ne.s32.totalorder %s25, %s28
      %p37 = scmp.eq.s32.totalorder %s20, 1
      %p38 = por %p36, %p37
      %p39 = scmp.ne.s32.totalorder %s28, %s29
      %p40 = scmp.eq.s32.totalorder %s20, 0
      %p41 = por %p39, %p40
      %p42 = scmp.ne.s32.totalorder %s28, %s29
      %p43 = scmp.eq.s32.totalorder %s21, 1
      %p44 = por %p42, %p43
      %p46 = scmp.ne.s32.totalorder %s29, %s45
      %p47 = scmp.eq.s32.totalorder %s21, 0
      %p48 = por %p46, %p47
      %s50 = sadd.s32 %s49, 1
      %p53 = scmp.eq.s32.totalorder %s15, 1
      %p54 = scmp.ne.s32.totalorder %s49, %s51
      %p55 = scmp.eq.s32.totalorder %s15, 0
      %p56 = por %p54, %p55
      %p57 = scmp.ne.s32.totalorder %s49, %s51
      %p58 = scmp.eq.s32.totalorder %s20, 1
      %p59 = por %p57, %p58
      %p60 = scmp.ne.s32.totalorder %s51, %s52
      %p61 = scmp.eq.s32.totalorder %s20, 0
      %p62 = por %p60, %p61
      %p63 = scmp.ne.s32.totalorder %s51, %s52
      %p64 = scmp.eq.s32.totalorder %s21, 1
      %p65 = por %p63, %p64
      %p67 = scmp.ne.s32.totalorder %s52, %s66
      %p68 = scmp.eq.s32.totalorder %s21, 0
      %p69 = por %p67, %p68
      %s70 = ssub.s32 %s15, %s22
      %p71 = scmp.eq.s32.totalorder %s70, 0
      %s73 = sadd.s32 %s72, 1
      %s74 = scalar_select %p71, %s72, %s73
      %p77 = pneg %p71
      %p78 = scmp.eq.s32.totalorder %s15, 1
      %p79 = por %p77, %p78
      %p80 = scmp.ne.s32.totalorder %s72, %s75
      %p81 = scmp.eq.s32.totalorder %s15, 0
      %p82 = por %p80, %p81
      %p83 = scmp.ne.s32.totalorder %s72, %s75
      %p84 = scmp.eq.s32.totalorder %s20, 1
      %p85 = por %p83, %p84
      %p86 = scmp.ne.s32.totalorder %s75, %s76
      %p87 = scmp.eq.s32.totalorder %s20, 0
      %p88 = por %p86, %p87
      %p89 = scmp.ne.s32.totalorder %s75, %s76
      %p90 = scmp.eq.s32.totalorder %s21, 1
      %p91 = por %p89, %p90
      %p93 = scmp.ne.s32.totalorder %s76, %s92
      %p94 = scmp.eq.s32.totalorder %s21, 0
      %p95 = por %p93, %p94
      %p96 = scmp.le.s32.totalorder 1, %s15
      %p97 = scmp.lt.s32.totalorder %s15, 3
      %p98 = pnand %p96, %p97
      %p99 = pneg %p98
      // Predicated region
      $region9: #{tpu_custom_call.1} parent=5 // pred_check
        _
      $region10: #{tpu_custom_call.1} parent=5 // pred_check_branch
        %101 = sbr.rel (%p98) target = $region12
      $region11: #{tpu_custom_call.1} parent=5 // pred_region
        %s102 = ssub.s32 %s15, 1
        // Predicated region
        $region13: #{tpu_custom_call.1} parent=11 // pred_check
          %p103 = pneg %p62
        $region14: #{tpu_custom_call.1} parent=11 // pred_check_branch
          %105 = sbr.rel (%p103) target = $region16
        $region15: #{tpu_custom_call.1} parent=11 // pred_region
          %107 = vsyncadd [#allocation6], 0
          %s109 = sshll.u32 %s1, 4
          %s110 = int_to_ptr.hbm [resolvable:$true] %s109
          %s111 = sshll.u32 [#allocation5], 4
          %s112 = int_to_ptr.vmem [resolvable:$true] %s111
          %114 = dma.hbm_to_vmem [thread:$0]  %s110, 16, %s112, [#allocation6]
        $region16: #{tpu_custom_call.1} parent=11 // pred_fallthru
          _
      $region12: #{tpu_custom_call.1} parent=5 // pred_fallthru
        _
      %p115 = scmp.lt.s32.totalorder %s15, 2
      // Predicated region
      $region17: #{tpu_custom_call.1} parent=5 // pred_check
        %p116 = pneg %p115
      $region18: #{tpu_custom_call.1} parent=5 // pred_check_branch
        %118 = sbr.rel (%p116) target = $region20
      $region19: #{tpu_custom_call.1} parent=5 // pred_region
        // Predicated region
        $region21: #{tpu_custom_call.1} parent=19 // pred_check
          %p119 = pneg %p35
        $region22: #{tpu_custom_call.1} parent=19 // pred_check_branch
          %121 = sbr.rel (%p119) target = $region24
        $region23: #{tpu_custom_call.1} parent=19 // pred_region
          %s122 = sand.u32 %s25, 1
          %s123 = scalar_lea.sflag [#allocation3], %s122
          %s124 = sand.u32 %s25, 1
          %s125 = smul.addr %s124, 8
          %s126 = scalar_lea.vmem [#allocation2], %s125
          %128 = vsyncadd %s123, 0
          %s129 = smul.addr %s15, 8
          %s130 = scalar_lea.hbm %s0, %s129
          %s132 = sshll.u32 %s130, 4
          %s133 = int_to_ptr.hbm [resolvable:$true] %s132
          %s134 = sshll.u32 %s126, 4
          %s135 = int_to_ptr.vmem [resolvable:$true] %s134
          %137 = dma.hbm_to_vmem [thread:$0]  %s133, 128, %s135, %s123
        $region24: #{tpu_custom_call.1} parent=19 // pred_fallthru
          _
      $region20: #{tpu_custom_call.1} parent=5 // pred_fallthru
        _
      %p138 = scmp.le.s32.totalorder 1, %s15
      %p139 = scmp.lt.s32.totalorder %s15, 3
      %p140 = pnand %p138, %p139
      %p141 = pneg %p140
      // Predicated region
      $region25: #{tpu_custom_call.1} parent=5 // pred_check
        _
      $region26: #{tpu_custom_call.1} parent=5 // pred_check_branch
        %143 = sbr.rel (%p140) target = $region28
      $region27: #{tpu_custom_call.1} parent=5 // pred_region
        %s144 = ssub.s32 %s15, 1
        %s145 = sand.u32 %s28, 1
        %s146 = scalar_lea.sflag [#allocation3], %s145
        %s147 = sand.u32 %s28, 1
        %s148 = smul.addr %s147, 8
        %s149 = scalar_lea.vmem [#allocation2], %s148
        // Predicated region
        $region29: #{tpu_custom_call.1} parent=27 // pred_check
          %p150 = pneg %p41
        $region30: #{tpu_custom_call.1} parent=27 // pred_check_branch
          %152 = sbr.rel (%p150) target = $region32
        $region31: #{tpu_custom_call.1} parent=27 // pred_region
          %154 = dma.done %s146, 128
        $region32: #{tpu_custom_call.1} parent=27 // pred_fallthru
          _
        // Predicated region
        $region33: #{tpu_custom_call.1} parent=27 // pred_check
          %p155 = pneg %p62
        $region34: #{tpu_custom_call.1} parent=27 // pred_check_branch
          %157 = sbr.rel (%p155) target = $region36
        $region35: #{tpu_custom_call.1} parent=27 // pred_region
          %159 = dma.done [#allocation6], 16
        $region36: #{tpu_custom_call.1} parent=27 // pred_fallthru
          _
        %s160 = sand.u32 %s28, 1
        %s161 = scalar_lea.sflag [#allocation3], %s160
        %s162 = sand.u32 %s28, 1
        %s163 = smul.addr %s162, 8
        %s164 = scalar_lea.vmem [#allocation2], %s163
        %p165 = pneg %p41
        %p166 = pneg %p38
        %p167 = pneg %p62
        %p168 = pneg %p59
        %p169 = pneg %p88
        %p170 = pneg %p85
        %s171 = sand.u32 %s75, 1
        %s172 = scalar_lea.sflag [#allocation4], %s171
        %s173 = sand.u32 %s75, 1
        %s174 = smul.addr %s173, 8
        %s175 = scalar_lea.vmem [#allocation7], %s174
        %v176 = vld [vmem:[%s149] sm:$0xff]
        %v177 = vmul.f32 %v176, %v176
        %178 = vadd.xlane.f32.xlu0 %v177
        %v179 = vpop.xlane.xlu0 %178
        %v180 = vmul.f32 %v179, 0.03125
        %v181 = vadd.f32 %v180, 1e-06
        %v182 = vrsqrt.pop %v181
        %v183 = vmul.f32 %v182, %v181
        %v184 = vmul.f32 %v183, %v182
        %v185 = vmul.f32 0.5, %v184
        %v186 = vsub.f32 1.5, %v185
        %v187 = vmul.f32 %v182, %v186
        %vm188 = vweird.f32 %v181
        %vm189 = vweird.f32 %v182
        %vm190 = vmor %vm188, %vm189
        %v191 = vsel %vm190, %v182, %v187
        %v192 = vld [vmem:[#allocation5] sm:$0x1]
        %v194 = vperm.slane %v192, 0
        %v196 = vmul.f32 %v194, %v191
        %197 = vst [vmem:[%s175] sm:$0xff] %v196
        %s198 = sand.u32 %s75, 1
        %s199 = scalar_lea.sflag [#allocation4], %s198
        %s200 = sand.u32 %s75, 1
        %s201 = smul.addr %s200, 8
        %s202 = scalar_lea.vmem [#allocation7], %s201
        // Predicated region
        $region37: #{tpu_custom_call.1} parent=27 // pred_check
          %p203 = pneg %p85
        $region38: #{tpu_custom_call.1} parent=27 // pred_check_branch
          %205 = sbr.rel (%p203) target = $region40
        $region39: #{tpu_custom_call.1} parent=27 // pred_region
          %207 = vsyncadd %s199, 0
          %s208 = smul.addr %s20, 8
          %s209 = scalar_lea.hbm %s2, %s208
          %s211 = sshll.u32 %s202, 4
          %s212 = int_to_ptr.vmem [resolvable:$true] %s211
          %s213 = sshll.u32 %s209, 4
          %s214 = int_to_ptr.hbm [resolvable:$true] %s213
          %216 = dma.vmem_to_hbm [thread:$0]  %s212, 128, %s214, %s199
        $region40: #{tpu_custom_call.1} parent=27 // pred_fallthru
          _
      $region28: #{tpu_custom_call.1} parent=5 // pred_fallthru
        _
      %p217 = scmp.le.s32.totalorder 2, %s15
      // Predicated region
      $region41: #{tpu_custom_call.1} parent=5 // pred_check
        %p218 = pneg %p217
      $region42: #{tpu_custom_call.1} parent=5 // pred_check_branch
        %220 = sbr.rel (%p218) target = $region44
      $region43: #{tpu_custom_call.1} parent=5 // pred_region
        %s221 = ssub.s32 %s15, 2
        // Predicated region
        $region45: #{tpu_custom_call.1} parent=43 // pred_check
          %p222 = pneg %p91
        $region46: #{tpu_custom_call.1} parent=43 // pred_check_branch
          %224 = sbr.rel (%p222) target = $region48
        $region47: #{tpu_custom_call.1} parent=43 // pred_region
          %s225 = sand.u32 %s76, 1
          %s226 = scalar_lea.sflag [#allocation4], %s225
          %s227 = sand.u32 %s76, 1
          %s228 = smul.addr %s227, 8
          %s229 = scalar_lea.vmem [#allocation7], %s228
          %231 = dma.done %s226, 128
        $region48: #{tpu_custom_call.1} parent=43 // pred_fallthru
          _
      $region44: #{tpu_custom_call.1} parent=5 // pred_fallthru
        _
    $region6: #{tpu_custom_call.1} parent=1 // loop_footer
      %s19 = sadd.s32 1, %s15
    $region7: #{tpu_custom_call.1} parent=1 // loop_footer_branch
      %14 = sbr.rel target = $region3
    $region8: #{tpu_custom_call.1} parent=1 // loop_exit
      _
    %232 = vsyncpa [#allocation3], 1
    %s233 = scalar_lea.sflag [#allocation3], 1
    %234 = vsyncpa %s233, 1
    %235 = vsyncpa [#allocation6], 1
    %236 = vsyncpa [#allocation4], 1
    %s237 = scalar_lea.sflag [#allocation4], 1
    %238 = vsyncpa %s237, 1

</llo_original>
